<compile_context>
chip_gen: v5e
topology: v5e:2x2
jax: 0.10.0
libtpu: 0.0.40
codegen_flags: <defaults>
</compile_context>

<pallas_src>
import jax
import jax.numpy as jnp
from jax.experimental import pallas as pl
from jax.experimental.pallas import tpu as pltpu

# Problem sizes (channel must be >= reduction so channel // reduction >= 1).
B = 2
C = 32
RED = 16
H = W = 16
KS = 5
STRIDE = 4
HP = H + 2                      # reflection pad 1 on each side
WP = W + 2
OH = (HP - KS) // STRIDE + 1    # = 4
OW = (WP - KS) // STRIDE + 1    # = 4
KK = KS * KS
OHW = OH * OW


def se_gate_kernel(patches_ref, dww_ref, mw_ref, w1_ref, w2_ref, gate_ref):
    # patches_ref: (1, KK, OHW, C)  im2col'd, reflection-padded input (this batch)
    # dww_ref    : (KK, OHW, C)     depthwise conv weights, pre-broadcast over OHW
    # mw_ref     : (1, C)           depthwise 1x1 "mask" conv weights
    # w1_ref     : (C // RED, C)    Linear1 weight (PyTorch layout)
    # w2_ref     : (C // RED, C)    Linear2 weight (transposed PyTorch layout)
    # gate_ref   : (1, 1, C)        sigmoid gate for this batch element

    # Depthwise 5x5 / stride-4 conv: 25 dense (OHW, C) FMAs on the VPU.
    acc = patches_ref[0, 0, :, :] * dww_ref[0, :, :]
    for k in range(1, KK):
        acc = acc + patches_ref[0, k, :, :] * dww_ref[k, :, :]

    feat = jnp.maximum(acc, 0.0)                               # ReLU        (OHW, C)
    vm = feat * jax.nn.sigmoid(feat * mw_ref[...])             # feat * mask (OHW, C)
    mean = jnp.mean(vm, axis=0, keepdims=True)                 # avg pool    (1, C)

    # Squeeze-excite MLP on the VPU (hidden dim C//RED is tiny; MXU would
    # only add latency for ~64 useful FLOPs).
    h = jnp.maximum(
        jnp.sum(mean * w1_ref[...], axis=1, keepdims=True), 0.0)   # (C//RED, 1)
    y = jnp.sum(h * w2_ref[...], axis=0, keepdims=True)            # (1, C)

    gate_ref[0] = jax.nn.sigmoid(y).astype(gate_ref.dtype)


def se_layer(x_nchw, dw_w, mask_w, lin1_w, lin2_w, state=1.0):
    """x_nchw: (B, C, H, W). dw_w: (C, KS, KS). mask_w: (C,).
    lin1_w: (C//RED, C) [PyTorch Linear layout]. lin2_w: (C, C//RED)."""
    b, c, hh, ww = x_nchw.shape
    oh = (hh + 2 - KS) // STRIDE + 1
    ow = (ww + 2 - KS) // STRIDE + 1
    kk = KS * KS
    ohw = oh * ow

    # Reflection pad (pure data movement) in XLA, directly in NCHW.
    xp = jnp.pad(x_nchw, ((0, 0), (0, 0), (1, 1), (1, 1)), mode="reflect")

    # im2col: gather the 25 strided conv taps -> (B, KK, OHW, C), C on lanes.
    cols = []
    for kh in range(KS):
        for kw in range(KS):
            sl = xp[:, :, kh::STRIDE, kw::STRIDE][:, :, :oh, :ow]   # (B, C, OH, OW)
            cols.append(sl.reshape(b, c, ohw))
    patches = jnp.stack(cols, axis=1)                 # (B, KK, C, OHW)
    patches = jnp.transpose(patches, (0, 1, 3, 2))    # (B, KK, OHW, C)

    # Weights: depthwise conv weights flattened & pre-broadcast (no in-kernel
    # broadcast_in_dim inside the unrolled conv loop).
    dww = jnp.transpose(dw_w.reshape(c, kk), (1, 0))                 # (KK, C)
    dww = jnp.broadcast_to(dww[:, None, :], (kk, ohw, c))            # (KK, OHW, C)
    mw = mask_w.reshape(1, c)                                        # (1, C)
    w1 = lin1_w                                                      # (C//RED, C)
    w2 = lin2_w.T                                                    # (C//RED, C)

    cost = pl.CostEstimate(
        flops=b * (2 * kk * ohw * c + 6 * ohw * c + 4 * (c // RED) * c),
        transcendentals=b * (ohw * c + c),
        bytes_accessed=4 * (b * kk * ohw * c + kk * ohw * c
                            + c + 2 * (c // RED) * c + b * c),
    )

    gate = pl.pallas_call(
        se_gate_kernel,
        out_shape=jax.ShapeDtypeStruct((b, 1, c), jnp.float32),
        grid_spec=pltpu.PrefetchScalarGridSpec(
            num_scalar_prefetch=0,
            grid=(b,),
            in_specs=[
                pl.BlockSpec((1, kk, ohw, c), lambda i: (i, 0, 0, 0)),
                pl.BlockSpec((kk, ohw, c), lambda i: (0, 0, 0)),
                pl.BlockSpec((1, c), lambda i: (0, 0)),
                pl.BlockSpec((c // RED, c), lambda i: (0, 0)),
                pl.BlockSpec((c // RED, c), lambda i: (0, 0)),
            ],
            out_specs=pl.BlockSpec((1, 1, c), lambda i: (i, 0, 0)),
        ),
        compiler_params=pltpu.CompilerParams(dimension_semantics=("parallel",)),
        cost_estimate=cost,
    )(patches, dww, mw, w1, w2)

    gate = gate[:, 0, :]                                             # (B, C)

    # Final broadcast gate multiply stays in XLA on the original NCHW input:
    # lane-dense, fused for free, and `state` is applied here so changing it
    # never retraces the Pallas kernel.
    out = x_nchw * (gate * state)[:, :, None, None]
    return out.astype(x_nchw.dtype)


def se_layer_reference(x_nchw, dw_w, mask_w, lin1_w, lin2_w, state=1.0):
    """Pure-JAX reference mirroring the PyTorch forward (NCHW)."""
    b, c, _, _ = x_nchw.shape
    xp = jnp.pad(x_nchw, ((0, 0), (0, 0), (1, 1), (1, 1)), mode="reflect")
    feat = jax.lax.conv_general_dilated(
        xp, dw_w.reshape(c, 1, KS, KS), window_strides=(STRIDE, STRIDE),
        padding="VALID", feature_group_count=c,
        dimension_numbers=("NCHW", "OIHW", "NCHW"))
    feat = jnp.maximum(feat, 0.0)
    mask = jax.nn.sigmoid(feat * mask_w.reshape(1, c, 1, 1))
    feat = feat * mask
    mean = feat.mean(axis=(2, 3))                        # (B, C)
    h = jnp.maximum(mean @ lin1_w.T, 0.0)
    y = h @ lin2_w.T
    weight = jax.nn.sigmoid(y) * state
    return x_nchw * weight[:, :, None, None]


if __name__ == "__main__":
    key = jax.random.PRNGKey(0)
    k1, k2, k3, k4, k5 = jax.random.split(key, 5)

    x = jax.random.normal(k1, (B, C, H, W), jnp.float32)
    dw_w = jax.random.normal(k2, (C, KS, KS), jnp.float32) * 0.1   # Conv2d(C,C,5,groups=C)
    mask_w = jax.random.normal(k3, (C,), jnp.float32) * 0.5        # Conv2d(C,C,1,groups=C)
    lin1_w = jax.random.normal(k4, (C // RED, C), jnp.float32) * 0.2
    lin2_w = jax.random.normal(k5, (C, C // RED), jnp.float32) * 0.2

    out = se_layer(x, dw_w, mask_w, lin1_w, lin2_w, state=1.0)
    out = jax.block_until_ready(out)

    ref = se_layer_reference(x, dw_w, mask_w, lin1_w, lin2_w, state=1.0)
    assert out.shape == x.shape and out.dtype == x.dtype
    assert jnp.allclose(out, ref, rtol=1e-3, atol=1e-3), "mismatch vs reference"

    print("KERNEL_OK")
</pallas_src>

<mosaic_0001>
module attributes {stable_mosaic.version = 11 : i64} {
  func.func @se_gate_kernel(%arg0: i32, %arg1: memref<1x25x16x32xf32, #tpu.memory_space<vmem>>, %arg2: memref<25x16x32xf32, #tpu.memory_space<vmem>>, %arg3: memref<1x32xf32, #tpu.memory_space<vmem>>, %arg4: memref<2x32xf32, #tpu.memory_space<vmem>>, %arg5: memref<2x32xf32, #tpu.memory_space<vmem>>, %arg6: memref<1x1x32xf32, #tpu.memory_space<vmem>>) attributes {dimension_semantics = [#tpu.dimension_semantics<parallel>], iteration_bounds = array<i64: 2>, scalar_prefetch = 0 : i64, scratch_operands = 0 : i64, tpu.core_type = #tpu.core_type<tc>, window_params = [{transform_indices = @transform_0, window_bounds = array<i64: 1, 25, 16, 32>}, {pipeline_mode = #tpu.pipeline_mode<synchronous>, transform_indices = @transform_1, window_bounds = array<i64: 25, 16, 32>}, {pipeline_mode = #tpu.pipeline_mode<synchronous>, transform_indices = @transform_2, window_bounds = array<i64: 1, 32>}, {pipeline_mode = #tpu.pipeline_mode<synchronous>, transform_indices = @transform_3, window_bounds = array<i64: 2, 32>}, {pipeline_mode = #tpu.pipeline_mode<synchronous>, transform_indices = @transform_4, window_bounds = array<i64: 2, 32>}, {transform_indices = @transform_5, window_bounds = array<i64: 1, 1, 32>}]} {
    %c0 = arith.constant 0 : index
    %c0_0 = arith.constant 0 : index
    %c0_1 = arith.constant 0 : index
    %c0_2 = arith.constant 0 : index
    %0 = vector.load %arg1[%c0, %c0_0, %c0_1, %c0_2] : memref<1x25x16x32xf32, #tpu.memory_space<vmem>>, vector<1x1x16x32xf32>
    %1 = vector.shape_cast %0 : vector<1x1x16x32xf32> to vector<16x32xf32>
    %c0_3 = arith.constant 0 : index
    %c0_4 = arith.constant 0 : index
    %c0_5 = arith.constant 0 : index
    %2 = vector.load %arg2[%c0_3, %c0_4, %c0_5] : memref<25x16x32xf32, #tpu.memory_space<vmem>>, vector<1x16x32xf32>
    %3 = vector.shape_cast %2 : vector<1x16x32xf32> to vector<16x32xf32>
    %4 = arith.mulf %1, %3 : vector<16x32xf32>
    %c0_6 = arith.constant 0 : index
    %c1 = arith.constant 1 : index
    %c0_7 = arith.constant 0 : index
    %c0_8 = arith.constant 0 : index
    %5 = vector.load %arg1[%c0_6, %c1, %c0_7, %c0_8] : memref<1x25x16x32xf32, #tpu.memory_space<vmem>>, vector<1x1x16x32xf32>
    %6 = vector.shape_cast %5 : vector<1x1x16x32xf32> to vector<16x32xf32>
    %c1_9 = arith.constant 1 : index
    %c0_10 = arith.constant 0 : index
    %c0_11 = arith.constant 0 : index
    %7 = vector.load %arg2[%c1_9, %c0_10, %c0_11] : memref<25x16x32xf32, #tpu.memory_space<vmem>>, vector<1x16x32xf32>
    %8 = vector.shape_cast %7 : vector<1x16x32xf32> to vector<16x32xf32>
    %9 = arith.mulf %6, %8 : vector<16x32xf32>
    %10 = arith.addf %4, %9 : vector<16x32xf32>
    %c0_12 = arith.constant 0 : index
    %c2 = arith.constant 2 : index
    %c0_13 = arith.constant 0 : index
    %c0_14 = arith.constant 0 : index
    %11 = vector.load %arg1[%c0_12, %c2, %c0_13, %c0_14] : memref<1x25x16x32xf32, #tpu.memory_space<vmem>>, vector<1x1x16x32xf32>
    %12 = vector.shape_cast %11 : vector<1x1x16x32xf32> to vector<16x32xf32>
    %c2_15 = arith.constant 2 : index
    %c0_16 = arith.constant 0 : index
    %c0_17 = arith.constant 0 : index
    %13 = vector.load %arg2[%c2_15, %c0_16, %c0_17] : memref<25x16x32xf32, #tpu.memory_space<vmem>>, vector<1x16x32xf32>
    %14 = vector.shape_cast %13 : vector<1x16x32xf32> to vector<16x32xf32>
    %15 = arith.mulf %12, %14 : vector<16x32xf32>
    %16 = arith.addf %10, %15 : vector<16x32xf32>
    %c0_18 = arith.constant 0 : index
    %c3 = arith.constant 3 : index
    %c0_19 = arith.constant 0 : index
    %c0_20 = arith.constant 0 : index
    %17 = vector.load %arg1[%c0_18, %c3, %c0_19, %c0_20] : memref<1x25x16x32xf32, #tpu.memory_space<vmem>>, vector<1x1x16x32xf32>
    %18 = vector.shape_cast %17 : vector<1x1x16x32xf32> to vector<16x32xf32>
    %c3_21 = arith.constant 3 : index
    %c0_22 = arith.constant 0 : index
    %c0_23 = arith.constant 0 : index
    %19 = vector.load %arg2[%c3_21, %c0_22, %c0_23] : memref<25x16x32xf32, #tpu.memory_space<vmem>>, vector<1x16x32xf32>
    %20 = vector.shape_cast %19 : vector<1x16x32xf32> to vector<16x32xf32>
    %21 = arith.mulf %18, %20 : vector<16x32xf32>
    %22 = arith.addf %16, %21 : vector<16x32xf32>
    %c0_24 = arith.constant 0 : index
    %c4 = arith.constant 4 : index
    %c0_25 = arith.constant 0 : index
    %c0_26 = arith.constant 0 : index
    %23 = vector.load %arg1[%c0_24, %c4, %c0_25, %c0_26] : memref<1x25x16x32xf32, #tpu.memory_space<vmem>>, vector<1x1x16x32xf32>
    %24 = vector.shape_cast %23 : vector<1x1x16x32xf32> to vector<16x32xf32>
    %c4_27 = arith.constant 4 : index
    %c0_28 = arith.constant 0 : index
    %c0_29 = arith.constant 0 : index
    %25 = vector.load %arg2[%c4_27, %c0_28, %c0_29] : memref<25x16x32xf32, #tpu.memory_space<vmem>>, vector<1x16x32xf32>
    %26 = vector.shape_cast %25 : vector<1x16x32xf32> to vector<16x32xf32>
    %27 = arith.mulf %24, %26 : vector<16x32xf32>
    %28 = arith.addf %22, %27 : vector<16x32xf32>
    %c0_30 = arith.constant 0 : index
    %c5 = arith.constant 5 : index
    %c0_31 = arith.constant 0 : index
    %c0_32 = arith.constant 0 : index
    %29 = vector.load %arg1[%c0_30, %c5, %c0_31, %c0_32] : memref<1x25x16x32xf32, #tpu.memory_space<vmem>>, vector<1x1x16x32xf32>
    %30 = vector.shape_cast %29 : vector<1x1x16x32xf32> to vector<16x32xf32>
    %c5_33 = arith.constant 5 : index
    %c0_34 = arith.constant 0 : index
    %c0_35 = arith.constant 0 : index
    %31 = vector.load %arg2[%c5_33, %c0_34, %c0_35] : memref<25x16x32xf32, #tpu.memory_space<vmem>>, vector<1x16x32xf32>
    %32 = vector.shape_cast %31 : vector<1x16x32xf32> to vector<16x32xf32>
    %33 = arith.mulf %30, %32 : vector<16x32xf32>
    %34 = arith.addf %28, %33 : vector<16x32xf32>
    %c0_36 = arith.constant 0 : index
    %c6 = arith.constant 6 : index
    %c0_37 = arith.constant 0 : index
    %c0_38 = arith.constant 0 : index
    %35 = vector.load %arg1[%c0_36, %c6, %c0_37, %c0_38] : memref<1x25x16x32xf32, #tpu.memory_space<vmem>>, vector<1x1x16x32xf32>
    %36 = vector.shape_cast %35 : vector<1x1x16x32xf32> to vector<16x32xf32>
    %c6_39 = arith.constant 6 : index
    %c0_40 = arith.constant 0 : index
    %c0_41 = arith.constant 0 : index
    %37 = vector.load %arg2[%c6_39, %c0_40, %c0_41] : memref<25x16x32xf32, #tpu.memory_space<vmem>>, vector<1x16x32xf32>
    %38 = vector.shape_cast %37 : vector<1x16x32xf32> to vector<16x32xf32>
    %39 = arith.mulf %36, %38 : vector<16x32xf32>
    %40 = arith.addf %34, %39 : vector<16x32xf32>
    %c0_42 = arith.constant 0 : index
    %c7 = arith.constant 7 : index
    %c0_43 = arith.constant 0 : index
    %c0_44 = arith.constant 0 : index
    %41 = vector.load %arg1[%c0_42, %c7, %c0_43, %c0_44] : memref<1x25x16x32xf32, #tpu.memory_space<vmem>>, vector<1x1x16x32xf32>
    %42 = vector.shape_cast %41 : vector<1x1x16x32xf32> to vector<16x32xf32>
    %c7_45 = arith.constant 7 : index
    %c0_46 = arith.constant 0 : index
    %c0_47 = arith.constant 0 : index
    %43 = vector.load %arg2[%c7_45, %c0_46, %c0_47] : memref<25x16x32xf32, #tpu.memory_space<vmem>>, vector<1x16x32xf32>
    %44 = vector.shape_cast %43 : vector<1x16x32xf32> to vector<16x32xf32>
    %45 = arith.mulf %42, %44 : vector<16x32xf32>
    %46 = arith.addf %40, %45 : vector<16x32xf32>
    %c0_48 = arith.constant 0 : index
    %c8 = arith.constant 8 : index
    %c0_49 = arith.constant 0 : index
    %c0_50 = arith.constant 0 : index
    %47 = vector.load %arg1[%c0_48, %c8, %c0_49, %c0_50] : memref<1x25x16x32xf32, #tpu.memory_space<vmem>>, vector<1x1x16x32xf32>
    %48 = vector.shape_cast %47 : vector<1x1x16x32xf32> to vector<16x32xf32>
    %c8_51 = arith.constant 8 : index
    %c0_52 = arith.constant 0 : index
    %c0_53 = arith.constant 0 : index
    %49 = vector.load %arg2[%c8_51, %c0_52, %c0_53] : memref<25x16x32xf32, #tpu.memory_space<vmem>>, vector<1x16x32xf32>
    %50 = vector.shape_cast %49 : vector<1x16x32xf32> to vector<16x32xf32>
    %51 = arith.mulf %48, %50 : vector<16x32xf32>
    %52 = arith.addf %46, %51 : vector<16x32xf32>
    %c0_54 = arith.constant 0 : index
    %c9 = arith.constant 9 : index
    %c0_55 = arith.constant 0 : index
    %c0_56 = arith.constant 0 : index
    %53 = vector.load %arg1[%c0_54, %c9, %c0_55, %c0_56] : memref<1x25x16x32xf32, #tpu.memory_space<vmem>>, vector<1x1x16x32xf32>
    %54 = vector.shape_cast %53 : vector<1x1x16x32xf32> to vector<16x32xf32>
    %c9_57 = arith.constant 9 : index
    %c0_58 = arith.constant 0 : index
    %c0_59 = arith.constant 0 : index
    %55 = vector.load %arg2[%c9_57, %c0_58, %c0_59] : memref<25x16x32xf32, #tpu.memory_space<vmem>>, vector<1x16x32xf32>
    %56 = vector.shape_cast %55 : vector<1x16x32xf32> to vector<16x32xf32>
    %57 = arith.mulf %54, %56 : vector<16x32xf32>
    %58 = arith.addf %52, %57 : vector<16x32xf32>
    %c0_60 = arith.constant 0 : index
    %c10 = arith.constant 10 : index
    %c0_61 = arith.constant 0 : index
    %c0_62 = arith.constant 0 : index
    %59 = vector.load %arg1[%c0_60, %c10, %c0_61, %c0_62] : memref<1x25x16x32xf32, #tpu.memory_space<vmem>>, vector<1x1x16x32xf32>
    %60 = vector.shape_cast %59 : vector<1x1x16x32xf32> to vector<16x32xf32>
    %c10_63 = arith.constant 10 : index
    %c0_64 = arith.constant 0 : index
    %c0_65 = arith.constant 0 : index
    %61 = vector.load %arg2[%c10_63, %c0_64, %c0_65] : memref<25x16x32xf32, #tpu.memory_space<vmem>>, vector<1x16x32xf32>
    %62 = vector.shape_cast %61 : vector<1x16x32xf32> to vector<16x32xf32>
    %63 = arith.mulf %60, %62 : vector<16x32xf32>
    %64 = arith.addf %58, %63 : vector<16x32xf32>
    %c0_66 = arith.constant 0 : index
    %c11 = arith.constant 11 : index
    %c0_67 = arith.constant 0 : index
    %c0_68 = arith.constant 0 : index
    %65 = vector.load %arg1[%c0_66, %c11, %c0_67, %c0_68] : memref<1x25x16x32xf32, #tpu.memory_space<vmem>>, vector<1x1x16x32xf32>
    %66 = vector.shape_cast %65 : vector<1x1x16x32xf32> to vector<16x32xf32>
    %c11_69 = arith.constant 11 : index
    %c0_70 = arith.constant 0 : index
    %c0_71 = arith.constant 0 : index
    %67 = vector.load %arg2[%c11_69, %c0_70, %c0_71] : memref<25x16x32xf32, #tpu.memory_space<vmem>>, vector<1x16x32xf32>
    %68 = vector.shape_cast %67 : vector<1x16x32xf32> to vector<16x32xf32>
    %69 = arith.mulf %66, %68 : vector<16x32xf32>
    %70 = arith.addf %64, %69 : vector<16x32xf32>
    %c0_72 = arith.constant 0 : index
    %c12 = arith.constant 12 : index
    %c0_73 = arith.constant 0 : index
    %c0_74 = arith.constant 0 : index
    %71 = vector.load %arg1[%c0_72, %c12, %c0_73, %c0_74] : memref<1x25x16x32xf32, #tpu.memory_space<vmem>>, vector<1x1x16x32xf32>
    %72 = vector.shape_cast %71 : vector<1x1x16x32xf32> to vector<16x32xf32>
    %c12_75 = arith.constant 12 : index
    %c0_76 = arith.constant 0 : index
    %c0_77 = arith.constant 0 : index
    %73 = vector.load %arg2[%c12_75, %c0_76, %c0_77] : memref<25x16x32xf32, #tpu.memory_space<vmem>>, vector<1x16x32xf32>
    %74 = vector.shape_cast %73 : vector<1x16x32xf32> to vector<16x32xf32>
    %75 = arith.mulf %72, %74 : vector<16x32xf32>
    %76 = arith.addf %70, %75 : vector<16x32xf32>
    %c0_78 = arith.constant 0 : index
    %c13 = arith.constant 13 : index
    %c0_79 = arith.constant 0 : index
    %c0_80 = arith.constant 0 : index
    %77 = vector.load %arg1[%c0_78, %c13, %c0_79, %c0_80] : memref<1x25x16x32xf32, #tpu.memory_space<vmem>>, vector<1x1x16x32xf32>
    %78 = vector.shape_cast %77 : vector<1x1x16x32xf32> to vector<16x32xf32>
    %c13_81 = arith.constant 13 : index
    %c0_82 = arith.constant 0 : index
    %c0_83 = arith.constant 0 : index
    %79 = vector.load %arg2[%c13_81, %c0_82, %c0_83] : memref<25x16x32xf32, #tpu.memory_space<vmem>>, vector<1x16x32xf32>
    %80 = vector.shape_cast %79 : vector<1x16x32xf32> to vector<16x32xf32>
    %81 = arith.mulf %78, %80 : vector<16x32xf32>
    %82 = arith.addf %76, %81 : vector<16x32xf32>
    %c0_84 = arith.constant 0 : index
    %c14 = arith.constant 14 : index
    %c0_85 = arith.constant 0 : index
    %c0_86 = arith.constant 0 : index
    %83 = vector.load %arg1[%c0_84, %c14, %c0_85, %c0_86] : memref<1x25x16x32xf32, #tpu.memory_space<vmem>>, vector<1x1x16x32xf32>
    %84 = vector.shape_cast %83 : vector<1x1x16x32xf32> to vector<16x32xf32>
    %c14_87 = arith.constant 14 : index
    %c0_88 = arith.constant 0 : index
    %c0_89 = arith.constant 0 : index
    %85 = vector.load %arg2[%c14_87, %c0_88, %c0_89] : memref<25x16x32xf32, #tpu.memory_space<vmem>>, vector<1x16x32xf32>
    %86 = vector.shape_cast %85 : vector<1x16x32xf32> to vector<16x32xf32>
    %87 = arith.mulf %84, %86 : vector<16x32xf32>
    %88 = arith.addf %82, %87 : vector<16x32xf32>
    %c0_90 = arith.constant 0 : index
    %c15 = arith.constant 15 : index
    %c0_91 = arith.constant 0 : index
    %c0_92 = arith.constant 0 : index
    %89 = vector.load %arg1[%c0_90, %c15, %c0_91, %c0_92] : memref<1x25x16x32xf32, #tpu.memory_space<vmem>>, vector<1x1x16x32xf32>
    %90 = vector.shape_cast %89 : vector<1x1x16x32xf32> to vector<16x32xf32>
    %c15_93 = arith.constant 15 : index
    %c0_94 = arith.constant 0 : index
    %c0_95 = arith.constant 0 : index
    %91 = vector.load %arg2[%c15_93, %c0_94, %c0_95] : memref<25x16x32xf32, #tpu.memory_space<vmem>>, vector<1x16x32xf32>
    %92 = vector.shape_cast %91 : vector<1x16x32xf32> to vector<16x32xf32>
    %93 = arith.mulf %90, %92 : vector<16x32xf32>
    %94 = arith.addf %88, %93 : vector<16x32xf32>
    %c0_96 = arith.constant 0 : index
    %c16 = arith.constant 16 : index
    %c0_97 = arith.constant 0 : index
    %c0_98 = arith.constant 0 : index
    %95 = vector.load %arg1[%c0_96, %c16, %c0_97, %c0_98] : memref<1x25x16x32xf32, #tpu.memory_space<vmem>>, vector<1x1x16x32xf32>
    %96 = vector.shape_cast %95 : vector<1x1x16x32xf32> to vector<16x32xf32>
    %c16_99 = arith.constant 16 : index
    %c0_100 = arith.constant 0 : index
    %c0_101 = arith.constant 0 : index
    %97 = vector.load %arg2[%c16_99, %c0_100, %c0_101] : memref<25x16x32xf32, #tpu.memory_space<vmem>>, vector<1x16x32xf32>
    %98 = vector.shape_cast %97 : vector<1x16x32xf32> to vector<16x32xf32>
    %99 = arith.mulf %96, %98 : vector<16x32xf32>
    %100 = arith.addf %94, %99 : vector<16x32xf32>
    %c0_102 = arith.constant 0 : index
    %c17 = arith.constant 17 : index
    %c0_103 = arith.constant 0 : index
    %c0_104 = arith.constant 0 : index
    %101 = vector.load %arg1[%c0_102, %c17, %c0_103, %c0_104] : memref<1x25x16x32xf32, #tpu.memory_space<vmem>>, vector<1x1x16x32xf32>
    %102 = vector.shape_cast %101 : vector<1x1x16x32xf32> to vector<16x32xf32>
    %c17_105 = arith.constant 17 : index
    %c0_106 = arith.constant 0 : index
    %c0_107 = arith.constant 0 : index
    %103 = vector.load %arg2[%c17_105, %c0_106, %c0_107] : memref<25x16x32xf32, #tpu.memory_space<vmem>>, vector<1x16x32xf32>
    %104 = vector.shape_cast %103 : vector<1x16x32xf32> to vector<16x32xf32>
    %105 = arith.mulf %102, %104 : vector<16x32xf32>
    %106 = arith.addf %100, %105 : vector<16x32xf32>
    %c0_108 = arith.constant 0 : index
    %c18 = arith.constant 18 : index
    %c0_109 = arith.constant 0 : index
    %c0_110 = arith.constant 0 : index
    %107 = vector.load %arg1[%c0_108, %c18, %c0_109, %c0_110] : memref<1x25x16x32xf32, #tpu.memory_space<vmem>>, vector<1x1x16x32xf32>
    %108 = vector.shape_cast %107 : vector<1x1x16x32xf32> to vector<16x32xf32>
    %c18_111 = arith.constant 18 : index
    %c0_112 = arith.constant 0 : index
    %c0_113 = arith.constant 0 : index
    %109 = vector.load %arg2[%c18_111, %c0_112, %c0_113] : memref<25x16x32xf32, #tpu.memory_space<vmem>>, vector<1x16x32xf32>
    %110 = vector.shape_cast %109 : vector<1x16x32xf32> to vector<16x32xf32>
    %111 = arith.mulf %108, %110 : vector<16x32xf32>
    %112 = arith.addf %106, %111 : vector<16x32xf32>
    %c0_114 = arith.constant 0 : index
    %c19 = arith.constant 19 : index
    %c0_115 = arith.constant 0 : index
    %c0_116 = arith.constant 0 : index
    %113 = vector.load %arg1[%c0_114, %c19, %c0_115, %c0_116] : memref<1x25x16x32xf32, #tpu.memory_space<vmem>>, vector<1x1x16x32xf32>
    %114 = vector.shape_cast %113 : vector<1x1x16x32xf32> to vector<16x32xf32>
    %c19_117 = arith.constant 19 : index
    %c0_118 = arith.constant 0 : index
    %c0_119 = arith.constant 0 : index
    %115 = vector.load %arg2[%c19_117, %c0_118, %c0_119] : memref<25x16x32xf32, #tpu.memory_space<vmem>>, vector<1x16x32xf32>
    %116 = vector.shape_cast %115 : vector<1x16x32xf32> to vector<16x32xf32>
    %117 = arith.mulf %114, %116 : vector<16x32xf32>
    %118 = arith.addf %112, %117 : vector<16x32xf32>
    %c0_120 = arith.constant 0 : index
    %c20 = arith.constant 20 : index
    %c0_121 = arith.constant 0 : index
    %c0_122 = arith.constant 0 : index
    %119 = vector.load %arg1[%c0_120, %c20, %c0_121, %c0_122] : memref<1x25x16x32xf32, #tpu.memory_space<vmem>>, vector<1x1x16x32xf32>
    %120 = vector.shape_cast %119 : vector<1x1x16x32xf32> to vector<16x32xf32>
    %c20_123 = arith.constant 20 : index
    %c0_124 = arith.constant 0 : index
    %c0_125 = arith.constant 0 : index
    %121 = vector.load %arg2[%c20_123, %c0_124, %c0_125] : memref<25x16x32xf32, #tpu.memory_space<vmem>>, vector<1x16x32xf32>
    %122 = vector.shape_cast %121 : vector<1x16x32xf32> to vector<16x32xf32>
    %123 = arith.mulf %120, %122 : vector<16x32xf32>
    %124 = arith.addf %118, %123 : vector<16x32xf32>
    %c0_126 = arith.constant 0 : index
    %c21 = arith.constant 21 : index
    %c0_127 = arith.constant 0 : index
    %c0_128 = arith.constant 0 : index
    %125 = vector.load %arg1[%c0_126, %c21, %c0_127, %c0_128] : memref<1x25x16x32xf32, #tpu.memory_space<vmem>>, vector<1x1x16x32xf32>
    %126 = vector.shape_cast %125 : vector<1x1x16x32xf32> to vector<16x32xf32>
    %c21_129 = arith.constant 21 : index
    %c0_130 = arith.constant 0 : index
    %c0_131 = arith.constant 0 : index
    %127 = vector.load %arg2[%c21_129, %c0_130, %c0_131] : memref<25x16x32xf32, #tpu.memory_space<vmem>>, vector<1x16x32xf32>
    %128 = vector.shape_cast %127 : vector<1x16x32xf32> to vector<16x32xf32>
    %129 = arith.mulf %126, %128 : vector<16x32xf32>
    %130 = arith.addf %124, %129 : vector<16x32xf32>
    %c0_132 = arith.constant 0 : index
    %c22 = arith.constant 22 : index
    %c0_133 = arith.constant 0 : index
    %c0_134 = arith.constant 0 : index
    %131 = vector.load %arg1[%c0_132, %c22, %c0_133, %c0_134] : memref<1x25x16x32xf32, #tpu.memory_space<vmem>>, vector<1x1x16x32xf32>
    %132 = vector.shape_cast %131 : vector<1x1x16x32xf32> to vector<16x32xf32>
    %c22_135 = arith.constant 22 : index
    %c0_136 = arith.constant 0 : index
    %c0_137 = arith.constant 0 : index
    %133 = vector.load %arg2[%c22_135, %c0_136, %c0_137] : memref<25x16x32xf32, #tpu.memory_space<vmem>>, vector<1x16x32xf32>
    %134 = vector.shape_cast %133 : vector<1x16x32xf32> to vector<16x32xf32>
    %135 = arith.mulf %132, %134 : vector<16x32xf32>
    %136 = arith.addf %130, %135 : vector<16x32xf32>
    %c0_138 = arith.constant 0 : index
    %c23 = arith.constant 23 : index
    %c0_139 = arith.constant 0 : index
    %c0_140 = arith.constant 0 : index
    %137 = vector.load %arg1[%c0_138, %c23, %c0_139, %c0_140] : memref<1x25x16x32xf32, #tpu.memory_space<vmem>>, vector<1x1x16x32xf32>
    %138 = vector.shape_cast %137 : vector<1x1x16x32xf32> to vector<16x32xf32>
    %c23_141 = arith.constant 23 : index
    %c0_142 = arith.constant 0 : index
    %c0_143 = arith.constant 0 : index
    %139 = vector.load %arg2[%c23_141, %c0_142, %c0_143] : memref<25x16x32xf32, #tpu.memory_space<vmem>>, vector<1x16x32xf32>
    %140 = vector.shape_cast %139 : vector<1x16x32xf32> to vector<16x32xf32>
    %141 = arith.mulf %138, %140 : vector<16x32xf32>
    %142 = arith.addf %136, %141 : vector<16x32xf32>
    %c0_144 = arith.constant 0 : index
    %c24 = arith.constant 24 : index
    %c0_145 = arith.constant 0 : index
    %c0_146 = arith.constant 0 : index
    %143 = vector.load %arg1[%c0_144, %c24, %c0_145, %c0_146] : memref<1x25x16x32xf32, #tpu.memory_space<vmem>>, vector<1x1x16x32xf32>
    %144 = vector.shape_cast %143 : vector<1x1x16x32xf32> to vector<16x32xf32>
    %c24_147 = arith.constant 24 : index
    %c0_148 = arith.constant 0 : index
    %c0_149 = arith.constant 0 : index
    %145 = vector.load %arg2[%c24_147, %c0_148, %c0_149] : memref<25x16x32xf32, #tpu.memory_space<vmem>>, vector<1x16x32xf32>
    %146 = vector.shape_cast %145 : vector<1x16x32xf32> to vector<16x32xf32>
    %147 = arith.mulf %144, %146 : vector<16x32xf32>
    %148 = arith.addf %142, %147 : vector<16x32xf32>
    %cst = arith.constant 0.000000e+00 : f32
    %149 = vector.broadcast %cst : f32 to vector<16x32xf32>
    %150 = arith.maximumf %148, %149 : vector<16x32xf32>
    %c0_150 = arith.constant 0 : index
    %c0_151 = arith.constant 0 : index
    %151 = vector.load %arg3[%c0_150, %c0_151] : memref<1x32xf32, #tpu.memory_space<vmem>>, vector<1x32xf32>
    %152 = vector.broadcast %151 : vector<1x32xf32> to vector<16x32xf32>
    %153 = arith.mulf %150, %152 : vector<16x32xf32>
    %154 = arith.negf %153 : vector<16x32xf32>
    %155 = math.exp %154 : vector<16x32xf32>
    %cst_152 = arith.constant 1.000000e+00 : f32
    %156 = vector.broadcast %cst_152 : f32 to vector<16x32xf32>
    %157 = arith.addf %156, %155 : vector<16x32xf32>
    %158 = arith.divf %156, %157 : vector<16x32xf32>
    %159 = arith.mulf %150, %158 : vector<16x32xf32>
    %cst_153 = arith.constant dense<0.000000e+00> : vector<32xf32>
    %160 = vector.multi_reduction <add>, %159, %cst_153 [0] : vector<16x32xf32> to vector<32xf32>
    %161 = vector.shape_cast %160 : vector<32xf32> to vector<1x32xf32>
    %cst_154 = arith.constant 1.600000e+01 : f32
    %162 = vector.broadcast %cst_154 : f32 to vector<1x32xf32>
    %163 = arith.divf %161, %162 : vector<1x32xf32>
    %c0_155 = arith.constant 0 : index
    %c0_156 = arith.constant 0 : index
    %164 = vector.load %arg4[%c0_155, %c0_156] : memref<2x32xf32, #tpu.memory_space<vmem>>, vector<2x32xf32>
    %165 = vector.broadcast %163 : vector<1x32xf32> to vector<2x32xf32>
    %166 = arith.mulf %165, %164 : vector<2x32xf32>
    %cst_157 = arith.constant dense<0.000000e+00> : vector<2xf32>
    %167 = vector.multi_reduction <add>, %166, %cst_157 [1] : vector<2x32xf32> to vector<2xf32>
    %168 = vector.shape_cast %167 : vector<2xf32> to vector<2x1xf32>
    %cst_158 = arith.constant 0.000000e+00 : f32
    %169 = vector.broadcast %cst_158 : f32 to vector<2x1xf32>
    %170 = arith.maximumf %168, %169 : vector<2x1xf32>
    %c0_159 = arith.constant 0 : index
    %c0_160 = arith.constant 0 : index
    %171 = vector.load %arg5[%c0_159, %c0_160] : memref<2x32xf32, #tpu.memory_space<vmem>>, vector<2x32xf32>
    %172 = vector.broadcast %170 : vector<2x1xf32> to vector<2x32xf32>
    %173 = arith.mulf %172, %171 : vector<2x32xf32>
    %cst_161 = arith.constant dense<0.000000e+00> : vector<32xf32>
    %174 = vector.multi_reduction <add>, %173, %cst_161 [0] : vector<2x32xf32> to vector<32xf32>
    %175 = vector.shape_cast %174 : vector<32xf32> to vector<1x32xf32>
    %176 = arith.negf %175 : vector<1x32xf32>
    %177 = math.exp %176 : vector<1x32xf32>
    %cst_162 = arith.constant 1.000000e+00 : f32
    %178 = vector.broadcast %cst_162 : f32 to vector<1x32xf32>
    %179 = arith.addf %178, %177 : vector<1x32xf32>
    %180 = arith.divf %178, %179 : vector<1x32xf32>
    %c0_163 = arith.constant 0 : index
    %c0_164 = arith.constant 0 : index
    %c0_165 = arith.constant 0 : index
    %181 = vector.load %arg6[%c0_163, %c0_164, %c0_165] : memref<1x1x32xf32, #tpu.memory_space<vmem>>, vector<1x1x32xf32>
    %182 = vector.shape_cast %181 : vector<1x1x32xf32> to vector<1x32xf32>
    %183 = vector.shape_cast %180 : vector<1x32xf32> to vector<1x1x32xf32>
    tpu.vector_store %arg6[%c0_163, %c0_164, %c0_165], %183 {strides = array<i32>} : memref<1x1x32xf32, #tpu.memory_space<vmem>>, vector<1x1x32xf32>,
    return
  }
  func.func @transform_0(%arg0: i32) -> (i32, i32, i32, i32) {
    %c0_i32 = arith.constant 0 : i32
    %c0_i32_0 = arith.constant 0 : i32
    %c0_i32_1 = arith.constant 0 : i32
    %c0_i32_2 = arith.constant 0 : i32
    return %arg0, %c0_i32, %c0_i32_0, %c0_i32_1 : i32, i32, i32, i32
  }
  func.func @transform_1(%arg0: i32) -> (i32, i32, i32) {
    %c0_i32 = arith.constant 0 : i32
    %c0_i32_0 = arith.constant 0 : i32
    %c0_i32_1 = arith.constant 0 : i32
    %c0_i32_2 = arith.constant 0 : i32
    return %c0_i32, %c0_i32_0, %c0_i32_1 : i32, i32, i32
  }
  func.func @transform_2(%arg0: i32) -> (i32, i32) {
    %c0_i32 = arith.constant 0 : i32
    %c0_i32_0 = arith.constant 0 : i32
    %c0_i32_1 = arith.constant 0 : i32
    return %c0_i32, %c0_i32_0 : i32, i32
  }
  func.func @transform_3(%arg0: i32) -> (i32, i32) {
    %c0_i32 = arith.constant 0 : i32
    %c0_i32_0 = arith.constant 0 : i32
    %c0_i32_1 = arith.constant 0 : i32
    return %c0_i32, %c0_i32_0 : i32, i32
  }
  func.func @transform_4(%arg0: i32) -> (i32, i32) {
    %c0_i32 = arith.constant 0 : i32
    %c0_i32_0 = arith.constant 0 : i32
    %c0_i32_1 = arith.constant 0 : i32
    return %c0_i32, %c0_i32_0 : i32, i32
  }
  func.func @transform_5(%arg0: i32) -> (i32, i32, i32) {
    %c0_i32 = arith.constant 0 : i32
    %c0_i32_0 = arith.constant 0 : i32
    %c0_i32_1 = arith.constant 0 : i32
    return %arg0, %c0_i32, %c0_i32_0 : i32, i32, i32
  }
}

</mosaic_0001>

<llo_original>
// kernel: tpu_custom_call.1
$region0: #{tpu_custom_call.1}
  #allocation0 [shape = 'u32[]', space=smem, size = 0x4, offset = 0x4, fixed_abs, tag = 'smem constant byte address 0x4 - core index']
  #allocation1 [shape = 'u32[72,128]{1,0:T(1,128)}', space=vmem, size = 0x9000, scoped, tag = 'internal scratch']
  %s0 = inlined_call_operand.hbm [shape: f32[2,25,16,32], index: 0, kind: input, shape index: {}]
  %s1 = inlined_call_operand.hbm [shape: f32[25,16,32], index: 1, kind: input, shape index: {}]
  %s2 = inlined_call_operand.hbm [shape: f32[1,32], index: 2, kind: input, shape index: {}]
  %s3 = inlined_call_operand.vmem [shape: f32[2,32], index: 3, kind: input, shape index: {}]
  %s4 = inlined_call_operand.hbm [shape: f32[2,32], index: 4, kind: input, shape index: {}]
  %s5 = inlined_call_operand.hbm [shape: f32[2,1,32], index: 5, kind: output, shape index: {}]
  %s6 = sld [smem:[#allocation0]]
  $region69: #{tpu_custom_call.1} parent=0
    _
  %s8 = ssub.s32 1, %s6
  %s9 = scalar_select 0, %s8, %s6
  $region1: #{tpu_custom_call.1} parent=0
    #allocation2 [shape = 'u8[409600]{0}', space=vmem, size = 0x64000, scoped, tag = 'input window, operand 0']
    #allocation3 [shape = 's32[2]{0}', space=sflag, size = 0x8, scoped, tag = 'scoped memory for tpu_custom_call.1']
    #allocation4 [shape = 's32[2]{0}', space=sflag, size = 0x8, scoped, tag = 'scoped memory for tpu_custom_call.1']
    #allocation5 [shape = 'u8[204800]{0}', space=vmem, size = 0x32000, scoped, tag = 'input window, operand 1, single buffered']
    #allocation6 [shape = 's32[1]{0}', space=sflag, size = 0x4, scoped, tag = 'scoped memory for tpu_custom_call.1']
    #allocation7 [shape = 'u8[512]{0}', space=vmem, size = 0x400, scoped, tag = 'input window, operand 2, single buffered']
    #allocation8 [shape = 'u8[1024]{0}', space=vmem, size = 0x400, scoped, tag = 'input window, operand 4, single buffered']
    #allocation9 [shape = 's32[1]{0}', space=sflag, size = 0x4, scoped, tag = 'scoped memory for tpu_custom_call.1']
    #allocation10 [shape = 'u8[1024]{0}', space=vmem, size = 0x400, scoped, tag = 'output window, operand 0']
    %10 = vsyncpa [#allocation3], 0
    %s11 = scalar_lea.sflag [#allocation3], 1
    %12 = vsyncpa %s11, 0
    %13 = vsyncpa [#allocation6], 0
    %14 = vsyncpa [#allocation9], 0
    %15 = vsyncpa [#allocation4], 0
    %s16 = scalar_lea.sflag [#allocation4], 1
    %17 = vsyncpa %s16, 0
    loop: start=0, step=1, limit=4
    $region2: #{tpu_custom_call.1} parent=1 // loop_pre_header
      _
    $region3: #{tpu_custom_call.1} parent=1 // loop_header
      %s19 = sphi 0, %s23
      %p20 = scmp.ge.s32.totalorder %s19, 4
      %s29 = sphi 0, %s31
      %s32 = sphi 0, %s29
      %s33 = sphi 0, %s32
      %s49 = sphi 0, %s33
      %s53 = sphi 0, %s53
      %s55 = sphi 0, %s53
      %s56 = sphi 0, %s55
      %s70 = sphi 0, %s56
      %s74 = sphi 0, %s74
      %s76 = sphi 0, %s74
      %s77 = sphi 0, %s76
      %s91 = sphi 0, %s77
      %s95 = sphi 0, %s95
      %s97 = sphi 0, %s95
      %s98 = sphi 0, %s97
      %s112 = sphi 0, %s98
      %s116 = sphi 0, %s116
      %s118 = sphi 0, %s116
      %s119 = sphi 0, %s118
      %s133 = sphi 0, %s119
      %s139 = sphi 0, %s141
      %s142 = sphi 0, %s139
      %s143 = sphi 0, %s142
      %s159 = sphi 0, %s143
    $region4: #{tpu_custom_call.1} parent=1 // loop_header_branch
      %22 = sbr.rel (%p20) target = $region8
    $region5: #{tpu_custom_call.1} parent=1 // loop_body
      %s24 = ssub.s32 %s19, 1
      %s25 = ssub.s32 %s19, 2
      %s26 = sadd.s32 %s19, 1
      %s27 = ssub.s32 %s19, %s26
      %p28 = scmp.eq.s32.totalorder %s27, 0
      %s30 = sadd.s32 %s29, 1
      %s31 = scalar_select %p28, %s29, %s30
      %p34 = pneg %p28
      %p35 = scmp.eq.s32.totalorder %s19, 1
      %p36 = por %p34, %p35
      %p37 = scmp.ne.s32.totalorder %s29, %s32
      %p38 = scmp.eq.s32.totalorder %s19, 0
      %p39 = por %p37, %p38
      %p40 = scmp.ne.s32.totalorder %s29, %s32
      %p41 = scmp.eq.s32.totalorder %s24, 1
      %p42 = por %p40, %p41
      %p43 = scmp.ne.s32.totalorder %s32, %s33
      %p44 = scmp.eq.s32.totalorder %s24, 0
      %p45 = por %p43, %p44
      %p46 = scmp.ne.s32.totalorder %s32, %s33
      %p47 = scmp.eq.s32.totalorder %s25, 1
      %p48 = por %p46, %p47
      %p50 = scmp.ne.s32.totalorder %s33, %s49
      %p51 = scmp.eq.s32.totalorder %s25, 0
      %p52 = por %p50, %p51
      %s54 = sadd.s32 %s53, 1
      %p57 = scmp.eq.s32.totalorder %s19, 1
      %p58 = scmp.ne.s32.totalorder %s53, %s55
      %p59 = scmp.eq.s32.totalorder %s19, 0
      %p60 = por %p58, %p59
      %p61 = scmp.ne.s32.totalorder %s53, %s55
      %p62 = scmp.eq.s32.totalorder %s24, 1
      %p63 = por %p61, %p62
      %p64 = scmp.ne.s32.totalorder %s55, %s56
      %p65 = scmp.eq.s32.totalorder %s24, 0
      %p66 = por %p64, %p65
      %p67 = scmp.ne.s32.totalorder %s55, %s56
      %p68 = scmp.eq.s32.totalorder %s25, 1
      %p69 = por %p67, %p68
      %p71 = scmp.ne.s32.totalorder %s56, %s70
      %p72 = scmp.eq.s32.totalorder %s25, 0
      %p73 = por %p71, %p72
      %s75 = sadd.s32 %s74, 1
      %p78 = scmp.eq.s32.totalorder %s19, 1
      %p79 = scmp.ne.s32.totalorder %s74, %s76
      %p80 = scmp.eq.s32.totalorder %s19, 0
      %p81 = por %p79, %p80
      %p82 = scmp.ne.s32.totalorder %s74, %s76
      %p83 = scmp.eq.s32.totalorder %s24, 1
      %p84 = por %p82, %p83
      %p85 = scmp.ne.s32.totalorder %s76, %s77
      %p86 = scmp.eq.s32.totalorder %s24, 0
      %p87 = por %p85, %p86
      %p88 = scmp.ne.s32.totalorder %s76, %s77
      %p89 = scmp.eq.s32.totalorder %s25, 1
      %p90 = por %p88, %p89
      %p92 = scmp.ne.s32.totalorder %s77, %s91
      %p93 = scmp.eq.s32.totalorder %s25, 0
      %p94 = por %p92, %p93
      %s96 = sadd.s32 %s95, 1
      %p99 = scmp.eq.s32.totalorder %s19, 1
      %p100 = scmp.ne.s32.totalorder %s95, %s97
      %p101 = scmp.eq.s32.totalorder %s19, 0
      %p102 = por %p100, %p101
      %p103 = scmp.ne.s32.totalorder %s95, %s97
      %p104 = scmp.eq.s32.totalorder %s24, 1
      %p105 = por %p103, %p104
      %p106 = scmp.ne.s32.totalorder %s97, %s98
      %p107 = scmp.eq.s32.totalorder %s24, 0
      %p108 = por %p106, %p107
      %p109 = scmp.ne.s32.totalorder %s97, %s98
      %p110 = scmp.eq.s32.totalorder %s25, 1
      %p111 = por %p109, %p110
      %p113 = scmp.ne.s32.totalorder %s98, %s112
      %p114 = scmp.eq.s32.totalorder %s25, 0
      %p115 = por %p113, %p114
      %s117 = sadd.s32 %s116, 1
      %p120 = scmp.eq.s32.totalorder %s19, 1
      %p121 = scmp.ne.s32.totalorder %s116, %s118
      %p122 = scmp.eq.s32.totalorder %s19, 0
      %p123 = por %p121, %p122
      %p124 = scmp.ne.s32.totalorder %s116, %s118
      %p125 = scmp.eq.s32.totalorder %s24, 1
      %p126 = por %p124, %p125
      %p127 = scmp.ne.s32.totalorder %s118, %s119
      %p128 = scmp.eq.s32.totalorder %s24, 0
      %p129 = por %p127, %p128
      %p130 = scmp.ne.s32.totalorder %s118, %s119
      %p131 = scmp.eq.s32.totalorder %s25, 1
      %p132 = por %p130, %p131
      %p134 = scmp.ne.s32.totalorder %s119, %s133
      %p135 = scmp.eq.s32.totalorder %s25, 0
      %p136 = por %p134, %p135
      %s137 = ssub.s32 %s19, %s26
      %p138 = scmp.eq.s32.totalorder %s137, 0
      %s140 = sadd.s32 %s139, 1
      %s141 = scalar_select %p138, %s139, %s140
      %p144 = pneg %p138
      %p145 = scmp.eq.s32.totalorder %s19, 1
      %p146 = por %p144, %p145
      %p147 = scmp.ne.s32.totalorder %s139, %s142
      %p148 = scmp.eq.s32.totalorder %s19, 0
      %p149 = por %p147, %p148
      %p150 = scmp.ne.s32.totalorder %s139, %s142
      %p151 = scmp.eq.s32.totalorder %s24, 1
      %p152 = por %p150, %p151
      %p153 = scmp.ne.s32.totalorder %s142, %s143
      %p154 = scmp.eq.s32.totalorder %s24, 0
      %p155 = por %p153, %p154
      %p156 = scmp.ne.s32.totalorder %s142, %s143
      %p157 = scmp.eq.s32.totalorder %s25, 1
      %p158 = por %p156, %p157
      %p160 = scmp.ne.s32.totalorder %s143, %s159
      %p161 = scmp.eq.s32.totalorder %s25, 0
      %p162 = por %p160, %p161
      %p163 = scmp.le.s32.totalorder 1, %s19
      %p164 = scmp.lt.s32.totalorder %s19, 3
      %p165 = pnand %p163, %p164
      %p166 = pneg %p165
      // Predicated region
      $region9: #{tpu_custom_call.1} parent=5 // pred_check
        _
      $region10: #{tpu_custom_call.1} parent=5 // pred_check_branch
        %168 = sbr.rel (%p165) target = $region12
      $region11: #{tpu_custom_call.1} parent=5 // pred_region
        %s169 = ssub.s32 %s19, 1
        // Predicated region
        $region13: #{tpu_custom_call.1} parent=11 // pred_check
          %p170 = pneg %p66
        $region14: #{tpu_custom_call.1} parent=11 // pred_check_branch
          %172 = sbr.rel (%p170) target = $region16
        $region15: #{tpu_custom_call.1} parent=11 // pred_region
          %174 = vsyncadd [#allocation6], 0
          %s175 = sshll.u32 %s1, 4
          %s176 = int_to_ptr.hbm [resolvable:$true] %s175
          %s177 = sshll.u32 [#allocation5], 4
          %s178 = int_to_ptr.vmem [resolvable:$true] %s177
          %183 = dma.hbm_to_vmem [thread:$0]  %s176, 6400, %s178, [#allocation6], 128, 128, 8
        $region16: #{tpu_custom_call.1} parent=11 // pred_fallthru
          _
        // Predicated region
        $region17: #{tpu_custom_call.1} parent=11 // pred_check
          %p184 = pneg %p87
        $region18: #{tpu_custom_call.1} parent=11 // pred_check_branch
          %186 = sbr.rel (%p184) target = $region20
        $region19: #{tpu_custom_call.1} parent=11 // pred_region
          %188 = vsyncadd [#allocation6], 0
          %s190 = sshll.u32 %s2, 4
          %s191 = int_to_ptr.hbm [resolvable:$true] %s190
          %s192 = sshll.u32 [#allocation7], 4
          %s193 = int_to_ptr.vmem [resolvable:$true] %s192
          %195 = dma.hbm_to_vmem [thread:$0]  %s191, 16, %s193, [#allocation6]
        $region20: #{tpu_custom_call.1} parent=11 // pred_fallthru
          _
        // Predicated region
        $region21: #{tpu_custom_call.1} parent=11 // pred_check
          %p196 = pneg %p108
        $region22: #{tpu_custom_call.1} parent=11 // pred_check_branch
          %198 = sbr.rel (%p196) target = $region24
        $region23: #{tpu_custom_call.1} parent=11 // pred_region
          _
        $region24: #{tpu_custom_call.1} parent=11 // pred_fallthru
          _
        // Predicated region
        $region25: #{tpu_custom_call.1} parent=11 // pred_check
          %p199 = pneg %p129
        $region26: #{tpu_custom_call.1} parent=11 // pred_check_branch
          %201 = sbr.rel (%p199) target = $region28
        $region27: #{tpu_custom_call.1} parent=11 // pred_region
          %203 = vsyncadd [#allocation9], 0
          %s205 = sshll.u32 %s4, 4
          %s206 = int_to_ptr.hbm [resolvable:$true] %s205
          %s207 = sshll.u32 [#allocation8], 4
          %s208 = int_to_ptr.vmem [resolvable:$true] %s207
          %210 = dma.hbm_to_vmem [thread:$0]  %s206, 32, %s208, [#allocation9]
        $region28: #{tpu_custom_call.1} parent=11 // pred_fallthru
          _
      $region12: #{tpu_custom_call.1} parent=5 // pred_fallthru
        _
      %p211 = scmp.lt.s32.totalorder %s19, 2
      // Predicated region
      $region29: #{tpu_custom_call.1} parent=5 // pred_check
        %p212 = pneg %p211
      $region30: #{tpu_custom_call.1} parent=5 // pred_check_branch
        %214 = sbr.rel (%p212) target = $region32
      $region31: #{tpu_custom_call.1} parent=5 // pred_region
        // Predicated region
        $region33: #{tpu_custom_call.1} parent=31 // pred_check
          %p215 = pneg %p39
        $region34: #{tpu_custom_call.1} parent=31 // pred_check_branch
          %217 = sbr.rel (%p215) target = $region36
        $region35: #{tpu_custom_call.1} parent=31 // pred_region
          %s218 = sand.u32 %s29, 1
          %s219 = scalar_lea.sflag [#allocation3], %s218
          %s220 = sand.u32 %s29, 1
          %s221 = smul.addr %s220, 400
          %s222 = scalar_lea.vmem [#allocation2], %s221
          %224 = vsyncadd %s219, 0
          %s225 = smul.addr %s19, 50
          %s226 = smul.addr %s225, 8
          %s227 = scalar_lea.hbm %s0, %s226
          %s228 = sshll.u32 %s227, 4
          %s229 = int_to_ptr.hbm [resolvable:$true] %s228
          %s230 = sshll.u32 %s222, 4
          %s231 = int_to_ptr.vmem [resolvable:$true] %s230
          %236 = dma.hbm_to_vmem [thread:$0]  %s229, 6400, %s231, %s219, 128, 128, 8
        $region36: #{tpu_custom_call.1} parent=31 // pred_fallthru
          _
      $region32: #{tpu_custom_call.1} parent=5 // pred_fallthru
        _
      %p237 = scmp.le.s32.totalorder 1, %s19
      %p238 = scmp.lt.s32.totalorder %s19, 3
      %p239 = pnand %p237, %p238
      %p240 = pneg %p239
      // Predicated region
      $region37: #{tpu_custom_call.1} parent=5 // pred_check
        _
      $region38: #{tpu_custom_call.1} parent=5 // pred_check_branch
        %242 = sbr.rel (%p239) target = $region40
      $region39: #{tpu_custom_call.1} parent=5 // pred_region
        %s243 = ssub.s32 %s19, 1
        %s244 = sand.u32 %s32, 1
        %s245 = scalar_lea.sflag [#allocation3], %s244
        %s246 = sand.u32 %s32, 1
        %s247 = smul.addr %s246, 400
        %s248 = scalar_lea.vmem [#allocation2], %s247
        // Predicated region
        $region41: #{tpu_custom_call.1} parent=39 // pred_check
          %p249 = pneg %p45
        $region42: #{tpu_custom_call.1} parent=39 // pred_check_branch
          %251 = sbr.rel (%p249) target = $region44
        $region43: #{tpu_custom_call.1} parent=39 // pred_region
          %253 = dma.done %s245, 6400
        $region44: #{tpu_custom_call.1} parent=39 // pred_fallthru
          _
        // Predicated region
        $region45: #{tpu_custom_call.1} parent=39 // pred_check
          %p254 = pneg %p66
        $region46: #{tpu_custom_call.1} parent=39 // pred_check_branch
          %256 = sbr.rel (%p254) target = $region48
        $region47: #{tpu_custom_call.1} parent=39 // pred_region
          %258 = dma.done [#allocation6], 6400
        $region48: #{tpu_custom_call.1} parent=39 // pred_fallthru
          _
        // Predicated region
        $region49: #{tpu_custom_call.1} parent=39 // pred_check
          %p259 = pneg %p87
        $region50: #{tpu_custom_call.1} parent=39 // pred_check_branch
          %261 = sbr.rel (%p259) target = $region52
        $region51: #{tpu_custom_call.1} parent=39 // pred_region
          %263 = dma.done [#allocation6], 16
        $region52: #{tpu_custom_call.1} parent=39 // pred_fallthru
          _
        // Predicated region
        $region53: #{tpu_custom_call.1} parent=39 // pred_check
          %p264 = pneg %p129
        $region54: #{tpu_custom_call.1} parent=39 // pred_check_branch
          %266 = sbr.rel (%p264) target = $region56
        $region55: #{tpu_custom_call.1} parent=39 // pred_region
          %268 = dma.done [#allocation9], 32
        $region56: #{tpu_custom_call.1} parent=39 // pred_fallthru
          _
        %s269 = sand.u32 %s32, 1
        %s270 = scalar_lea.sflag [#allocation3], %s269
        %s271 = sand.u32 %s32, 1
        %s272 = smul.addr %s271, 400
        %s273 = scalar_lea.vmem [#allocation2], %s272
        %p274 = pneg %p45
        %p275 = pneg %p42
        %p276 = pneg %p66
        %p277 = pneg %p63
        %p278 = pneg %p87
        %p279 = pneg %p84
        %p280 = pneg %p108
        %p281 = pneg %p105
        %p282 = pneg %p129
        %p283 = pneg %p126
        %p284 = pneg %p155
        %p285 = pneg %p152
        %s286 = sand.u32 %s142, 1
        %s287 = scalar_lea.sflag [#allocation4], %s286
        %s288 = sand.u32 %s142, 1
        %s289 = scalar_lea.vmem [#allocation10], %s288
        %v290 = vld [vmem:[%s248] sm:$0xff]
        %v291 = vld [vmem:[%s248 + $0x8] sm:$0xff]
        %v292 = vld [vmem:[#allocation5] sm:$0xff]
        %v293 = vld [vmem:[#allocation5 + $0x8] sm:$0xff]
        %v294 = vmul.f32 %v290, %v292
        %v295 = vmul.f32 %v291, %v293
        %s296 = scalar_lea.vmem %s248, 16 [#allocation2]
        %v297 = vld [vmem:[%s296] sm:$0xff]
        %v298 = vld [vmem:[%s296 + $0x8] sm:$0xff]
        %s299 = scalar_lea.vmem [#allocation5], 16
        %v300 = vld [vmem:[%s299] sm:$0xff]
        %v301 = vld [vmem:[%s299 + $0x8] sm:$0xff]
        %v302 = vmul.f32 %v297, %v300
        %v303 = vmul.f32 %v298, %v301
        %v304 = vadd.f32 %v294, %v302
        %v305 = vadd.f32 %v295, %v303
        %s306 = scalar_lea.vmem %s248, 32 [#allocation2]
        %v307 = vld [vmem:[%s306] sm:$0xff]
        %v308 = vld [vmem:[%s306 + $0x8] sm:$0xff]
        %s309 = scalar_lea.vmem [#allocation5], 32
        %v310 = vld [vmem:[%s309] sm:$0xff]
        %v311 = vld [vmem:[%s309 + $0x8] sm:$0xff]
        %v312 = vmul.f32 %v307, %v310
        %v313 = vmul.f32 %v308, %v311
        %v314 = vadd.f32 %v304, %v312
        %v315 = vadd.f32 %v305, %v313
        %s316 = scalar_lea.vmem %s248, 48 [#allocation2]
        %v317 = vld [vmem:[%s316] sm:$0xff]
        %v318 = vld [vmem:[%s316 + $0x8] sm:$0xff]
        %s319 = scalar_lea.vmem [#allocation5], 48
        %v320 = vld [vmem:[%s319] sm:$0xff]
        %v321 = vld [vmem:[%s319 + $0x8] sm:$0xff]
        %v322 = vmul.f32 %v317, %v320
        %v323 = vmul.f32 %v318, %v321
        %v324 = vadd.f32 %v314, %v322
        %v325 = vadd.f32 %v315, %v323
        %s326 = scalar_lea.vmem %s248, 64 [#allocation2]
        %v327 = vld [vmem:[%s326] sm:$0xff]
        %v328 = vld [vmem:[%s326 + $0x8] sm:$0xff]
        %s329 = scalar_lea.vmem [#allocation5], 64
        %v330 = vld [vmem:[%s329] sm:$0xff]
        %v331 = vld [vmem:[%s329 + $0x8] sm:$0xff]
        %v332 = vmul.f32 %v327, %v330
        %v333 = vmul.f32 %v328, %v331
        %v334 = vadd.f32 %v324, %v332
        %v335 = vadd.f32 %v325, %v333
        %s336 = scalar_lea.vmem %s248, 80 [#allocation2]
        %v337 = vld [vmem:[%s336] sm:$0xff]
        %v338 = vld [vmem:[%s336 + $0x8] sm:$0xff]
        %s339 = scalar_lea.vmem [#allocation5], 80
        %v340 = vld [vmem:[%s339] sm:$0xff]
        %v341 = vld [vmem:[%s339 + $0x8] sm:$0xff]
        %v342 = vmul.f32 %v337, %v340
        %v343 = vmul.f32 %v338, %v341
        %v344 = vadd.f32 %v334, %v342
        %v345 = vadd.f32 %v335, %v343
        %s346 = scalar_lea.vmem %s248, 96 [#allocation2]
        %v347 = vld [vmem:[%s346] sm:$0xff]
        %v348 = vld [vmem:[%s346 + $0x8] sm:$0xff]
        %s349 = scalar_lea.vmem [#allocation5], 96
        %v350 = vld [vmem:[%s349] sm:$0xff]
        %v351 = vld [vmem:[%s349 + $0x8] sm:$0xff]
        %v352 = vmul.f32 %v347, %v350
        %v353 = vmul.f32 %v348, %v351
        %v354 = vadd.f32 %v344, %v352
        %v355 = vadd.f32 %v345, %v353
        %s356 = scalar_lea.vmem %s248, 112 [#allocation2]
        %v357 = vld [vmem:[%s356] sm:$0xff]
        %v358 = vld [vmem:[%s356 + $0x8] sm:$0xff]
        %s359 = scalar_lea.vmem [#allocation5], 112
        %v360 = vld [vmem:[%s359] sm:$0xff]
        %v361 = vld [vmem:[%s359 + $0x8] sm:$0xff]
        %v362 = vmul.f32 %v357, %v360
        %v363 = vmul.f32 %v358, %v361
        %v364 = vadd.f32 %v354, %v362
        %v365 = vadd.f32 %v355, %v363
        %s366 = scalar_lea.vmem %s248, 128 [#allocation2]
        %v367 = vld [vmem:[%s366] sm:$0xff]
        %v368 = vld [vmem:[%s366 + $0x8] sm:$0xff]
        %s369 = scalar_lea.vmem [#allocation5], 128
        %v370 = vld [vmem:[%s369] sm:$0xff]
        %v371 = vld [vmem:[%s369 + $0x8] sm:$0xff]
        %v372 = vmul.f32 %v367, %v370
        %v373 = vmul.f32 %v368, %v371
        %v374 = vadd.f32 %v364, %v372
        %v375 = vadd.f32 %v365, %v373
        %s376 = scalar_lea.vmem %s248, 144 [#allocation2]
        %v377 = vld [vmem:[%s376] sm:$0xff]
        %v378 = vld [vmem:[%s376 + $0x8] sm:$0xff]
        %s379 = scalar_lea.vmem [#allocation5], 144
        %v380 = vld [vmem:[%s379] sm:$0xff]
        %v381 = vld [vmem:[%s379 + $0x8] sm:$0xff]
        %v382 = vmul.f32 %v377, %v380
        %v383 = vmul.f32 %v378, %v381
        %v384 = vadd.f32 %v374, %v382
        %v385 = vadd.f32 %v375, %v383
        %s386 = scalar_lea.vmem %s248, 160 [#allocation2]
        %v387 = vld [vmem:[%s386] sm:$0xff]
        %v388 = vld [vmem:[%s386 + $0x8] sm:$0xff]
        %s389 = scalar_lea.vmem [#allocation5], 160
        %v390 = vld [vmem:[%s389] sm:$0xff]
        %v391 = vld [vmem:[%s389 + $0x8] sm:$0xff]
        %v392 = vmul.f32 %v387, %v390
        %v393 = vmul.f32 %v388, %v391
        %v394 = vadd.f32 %v384, %v392
        %v395 = vadd.f32 %v385, %v393
        %s396 = scalar_lea.vmem %s248, 176 [#allocation2]
        %v397 = vld [vmem:[%s396] sm:$0xff]
        %v398 = vld [vmem:[%s396 + $0x8] sm:$0xff]
        %s399 = scalar_lea.vmem [#allocation5], 176
        %v400 = vld [vmem:[%s399] sm:$0xff]
        %v401 = vld [vmem:[%s399 + $0x8] sm:$0xff]
        %v402 = vmul.f32 %v397, %v400
        %v403 = vmul.f32 %v398, %v401
        %v404 = vadd.f32 %v394, %v402
        %v405 = vadd.f32 %v395, %v403
        %s406 = scalar_lea.vmem %s248, 192 [#allocation2]
        %v407 = vld [vmem:[%s406] sm:$0xff]
        %v408 = vld [vmem:[%s406 + $0x8] sm:$0xff]
        %s409 = scalar_lea.vmem [#allocation5], 192
        %v410 = vld [vmem:[%s409] sm:$0xff]
        %v411 = vld [vmem:[%s409 + $0x8] sm:$0xff]
        %v412 = vmul.f32 %v407, %v410
        %v413 = vmul.f32 %v408, %v411
        %v414 = vadd.f32 %v404, %v412
        %v415 = vadd.f32 %v405, %v413
        %s416 = scalar_lea.vmem %s248, 208 [#allocation2]
        %v417 = vld [vmem:[%s416] sm:$0xff]
        %v418 = vld [vmem:[%s416 + $0x8] sm:$0xff]
        %s419 = scalar_lea.vmem [#allocation5], 208
        %v420 = vld [vmem:[%s419] sm:$0xff]
        %v421 = vld [vmem:[%s419 + $0x8] sm:$0xff]
        %v422 = vmul.f32 %v417, %v420
        %v423 = vmul.f32 %v418, %v421
        %v424 = vadd.f32 %v414, %v422
        %v425 = vadd.f32 %v415, %v423
        %s426 = scalar_lea.vmem %s248, 224 [#allocation2]
        %v427 = vld [vmem:[%s426] sm:$0xff]
        %v428 = vld [vmem:[%s426 + $0x8] sm:$0xff]
        %s429 = scalar_lea.vmem [#allocation5], 224
        %v430 = vld [vmem:[%s429] sm:$0xff]
        %v431 = vld [vmem:[%s429 + $0x8] sm:$0xff]
        %v432 = vmul.f32 %v427, %v430
        %v433 = vmul.f32 %v428, %v431
        %v434 = vadd.f32 %v424, %v432
        %v435 = vadd.f32 %v425, %v433
        %s436 = scalar_lea.vmem %s248, 240 [#allocation2]
        %v437 = vld [vmem:[%s436] sm:$0xff]
        %v438 = vld [vmem:[%s436 + $0x8] sm:$0xff]
        %s439 = scalar_lea.vmem [#allocation5], 240
        %v440 = vld [vmem:[%s439] sm:$0xff]
        %v441 = vld [vmem:[%s439 + $0x8] sm:$0xff]
        %v442 = vmul.f32 %v437, %v440
        %v443 = vmul.f32 %v438, %v441
        %v444 = vadd.f32 %v434, %v442
        %v445 = vadd.f32 %v435, %v443
        %s446 = scalar_lea.vmem %s248, 256 [#allocation2]
        %v447 = vld [vmem:[%s446] sm:$0xff]
        %v448 = vld [vmem:[%s446 + $0x8] sm:$0xff]
        %s449 = scalar_lea.vmem [#allocation5], 256
        %v450 = vld [vmem:[%s449] sm:$0xff]
        %v451 = vld [vmem:[%s449 + $0x8] sm:$0xff]
        %v452 = vmul.f32 %v447, %v450
        %v453 = vmul.f32 %v448, %v451
        %v454 = vadd.f32 %v444, %v452
        %v455 = vadd.f32 %v445, %v453
        %s456 = scalar_lea.vmem %s248, 272 [#allocation2]
        %v457 = vld [vmem:[%s456] sm:$0xff]
        %v458 = vld [vmem:[%s456 + $0x8] sm:$0xff]
        %s459 = scalar_lea.vmem [#allocation5], 272
        %v460 = vld [vmem:[%s459] sm:$0xff]
        %v461 = vld [vmem:[%s459 + $0x8] sm:$0xff]
        %v462 = vmul.f32 %v457, %v460
        %v463 = vmul.f32 %v458, %v461
        %v464 = vadd.f32 %v454, %v462
        %v465 = vadd.f32 %v455, %v463
        %s466 = scalar_lea.vmem %s248, 288 [#allocation2]
        %v467 = vld [vmem:[%s466] sm:$0xff]
        %v468 = vld [vmem:[%s466 + $0x8] sm:$0xff]
        %s469 = scalar_lea.vmem [#allocation5], 288
        %v470 = vld [vmem:[%s469] sm:$0xff]
        %v471 = vld [vmem:[%s469 + $0x8] sm:$0xff]
        %v472 = vmul.f32 %v467, %v470
        %v473 = vmul.f32 %v468, %v471
        %v474 = vadd.f32 %v464, %v472
        %v475 = vadd.f32 %v465, %v473
        %s476 = scalar_lea.vmem %s248, 304 [#allocation2]
        %v477 = vld [vmem:[%s476] sm:$0xff]
        %v478 = vld [vmem:[%s476 + $0x8] sm:$0xff]
        %s479 = scalar_lea.vmem [#allocation5], 304
        %v480 = vld [vmem:[%s479] sm:$0xff]
        %v481 = vld [vmem:[%s479 + $0x8] sm:$0xff]
        %v482 = vmul.f32 %v477, %v480
        %v483 = vmul.f32 %v478, %v481
        %v484 = vadd.f32 %v474, %v482
        %v485 = vadd.f32 %v475, %v483
        %s486 = scalar_lea.vmem %s248, 320 [#allocation2]
        %v487 = vld [vmem:[%s486] sm:$0xff]
        %v488 = vld [vmem:[%s486 + $0x8] sm:$0xff]
        %s489 = scalar_lea.vmem [#allocation5], 320
        %v490 = vld [vmem:[%s489] sm:$0xff]
        %v491 = vld [vmem:[%s489 + $0x8] sm:$0xff]
        %v492 = vmul.f32 %v487, %v490
        %v493 = vmul.f32 %v488, %v491
        %v494 = vadd.f32 %v484, %v492
        %v495 = vadd.f32 %v485, %v493
        %s496 = scalar_lea.vmem %s248, 336 [#allocation2]
        %v497 = vld [vmem:[%s496] sm:$0xff]
        %v498 = vld [vmem:[%s496 + $0x8] sm:$0xff]
        %s499 = scalar_lea.vmem [#allocation5], 336
        %v500 = vld [vmem:[%s499] sm:$0xff]
        %v501 = vld [vmem:[%s499 + $0x8] sm:$0xff]
        %v502 = vmul.f32 %v497, %v500
        %v503 = vmul.f32 %v498, %v501
        %v504 = vadd.f32 %v494, %v502
        %v505 = vadd.f32 %v495, %v503
        %s506 = scalar_lea.vmem %s248, 352 [#allocation2]
        %v507 = vld [vmem:[%s506] sm:$0xff]
        %v508 = vld [vmem:[%s506 + $0x8] sm:$0xff]
        %s509 = scalar_lea.vmem [#allocation5], 352
        %v510 = vld [vmem:[%s509] sm:$0xff]
        %v511 = vld [vmem:[%s509 + $0x8] sm:$0xff]
        %v512 = vmul.f32 %v507, %v510
        %v513 = vmul.f32 %v508, %v511
        %v514 = vadd.f32 %v504, %v512
        %v515 = vadd.f32 %v505, %v513
        %s516 = scalar_lea.vmem %s248, 368 [#allocation2]
        %v517 = vld [vmem:[%s516] sm:$0xff]
        %v518 = vld [vmem:[%s516 + $0x8] sm:$0xff]
        %s519 = scalar_lea.vmem [#allocation5], 368
        %v520 = vld [vmem:[%s519] sm:$0xff]
        %v521 = vld [vmem:[%s519 + $0x8] sm:$0xff]
        %v522 = vmul.f32 %v517, %v520
        %v523 = vmul.f32 %v518, %v521
        %v524 = vadd.f32 %v514, %v522
        %v525 = vadd.f32 %v515, %v523
        %s526 = scalar_lea.vmem %s248, 384 [#allocation2]
        %v527 = vld [vmem:[%s526] sm:$0xff]
        %v528 = vld [vmem:[%s526 + $0x8] sm:$0xff]
        %s529 = scalar_lea.vmem [#allocation5], 384
        %v530 = vld [vmem:[%s529] sm:$0xff]
        %v531 = vld [vmem:[%s529 + $0x8] sm:$0xff]
        %v532 = vmul.f32 %v527, %v530
        %v533 = vmul.f32 %v528, %v531
        %v534 = vadd.f32 %v524, %v532
        %v535 = vadd.f32 %v525, %v533
        %v536 = vmax.f32 %v534, 0.0
        %v537 = vmax.f32 %v535, 0.0
        %v538 = vld [vmem:[#allocation7] sm:$0x1]
        %v540 = vperm.slane %v538, 0
        %v542 = vmul.f32 %v536, %v540
        %v543 = vmul.f32 %v537, %v540
        %v544 = vxor.u32 %v542, 2147483648
        %v545 = vxor.u32 %v543, 2147483648
        %v546 = vmul.f32 %v544, 1.442695
        %v547 = vpow.pop %v546
        %v548 = vmul.f32 %v545, 1.442695
        %v549 = vpow.pop %v548
        %v550 = vadd.f32 %v547, 1.0
        %v551 = vadd.f32 %v549, 1.0
        %v552 = vrcp.pop %v550
        %v553 = vmul.f32 %v550, %v552
        %v554 = vsub.f32 1.0, %v553
        %v555 = vmul.f32 %v552, %v554
        %v556 = vadd.f32 %v552, %v555
        %vm557 = vweird.f32 %v550
        %vm558 = vweird.f32 %v552
        %vm559 = vmor %vm557, %vm558
        %v560 = vsel %vm559, %v552, %v556
        %v561 = vand.u32 2147483647, %v550
        %vm562 = vcmp.eq.f32.partialorder %v561, 8.507059e+37
        %v563 = vand.u32 %v550, 2147483648
        %v564 = vor.u32 1.1754944e-38, %v563
        %v565 = vsel %vm562, %v564, %v560
        %v566 = vmul.f32 1.0, %v565
        %v567 = vrcp.pop %v551
        %v568 = vmul.f32 %v551, %v567
        %v569 = vsub.f32 1.0, %v568
        %v570 = vmul.f32 %v567, %v569
        %v571 = vadd.f32 %v567, %v570
        %vm572 = vweird.f32 %v551
        %vm573 = vweird.f32 %v567
        %vm574 = vmor %vm572, %vm573
        %v575 = vsel %vm574, %v567, %v571
        %v576 = vand.u32 2147483647, %v551
        %vm577 = vcmp.eq.f32.partialorder %v576, 8.507059e+37
        %v578 = vand.u32 %v551, 2147483648
        %v579 = vor.u32 1.1754944e-38, %v578
        %v580 = vsel %vm577, %v579, %v575
        %v581 = vmul.f32 1.0, %v580
        %v582 = vmul.f32 %v536, %v566
        %v583 = vmul.f32 %v537, %v581
        %vm584 = vcmask 261120
        %v585 = vsel %vm584, %v582, 0.0
        %v586 = vsel %vm584, %v583, 0.0
        %v587 = vadd.f32 %v585, %v586
        %v588 = vrot.slane %v587, 4
        %v589 = vadd.f32 %v587, %v588
        %v590 = vrot.slane %v589, 2
        %v591 = vadd.f32 %v589, %v590
        %v592 = vrot.slane %v591, 1
        %v593 = vadd.f32 %v591, %v592
        %v594 = vrcp.pop 16.0
        %v595 = vmul.f32 16.0, %v594
        %v596 = vsub.f32 1.0, %v595
        %v597 = vmul.f32 %v594, %v596
        %v598 = vadd.f32 %v594, %v597
        %vm599 = vweird.f32 %v594
        %v600 = vsel %vm599, %v594, %v598
        %v601 = vmul.f32 %v593, %v600
        %v602 = vld [vmem:[%s3] sm:$0x3]
        %v603 = vmul.f32 %v601, %v602
        %vm604 = vcmask 254976
        %v605 = vsel %vm604, %v603, 0.0
        %606 = vadd.xlane.f32.xlu0 %v605
        %v607 = vpop.xlane.xlu0 %606
        %v608 = vmax.f32 %v607, 0.0
        %v609 = vld [vmem:[#allocation8] sm:$0x3]
        %v610 = vmul.f32 %v608, %v609
        %v611 = vsel %vm604, %v610, 0.0
        %v612 = vrot.slane %v611, 4
        %v613 = vadd.f32 %v611, %v612
        %v614 = vrot.slane %v613, 2
        %v615 = vadd.f32 %v613, %v614
        %v616 = vrot.slane %v615, 1
        %v617 = vadd.f32 %v615, %v616
        %v618 = vxor.u32 %v617, 2147483648
        %v619 = vmul.f32 %v618, 1.442695
        %v620 = vpow.pop %v619
        %v621 = vadd.f32 %v620, 1.0
        %v622 = vrcp.pop %v621
        %v623 = vmul.f32 %v621, %v622
        %v624 = vsub.f32 1.0, %v623
        %v625 = vmul.f32 %v622, %v624
        %v626 = vadd.f32 %v622, %v625
        %vm627 = vweird.f32 %v621
        %vm628 = vweird.f32 %v622
        %vm629 = vmor %vm627, %vm628
        %v630 = vsel %vm629, %v622, %v626
        %v631 = vand.u32 2147483647, %v621
        %vm632 = vcmp.eq.f32.partialorder %v631, 8.507059e+37
        %v633 = vand.u32 %v621, 2147483648
        %v634 = vor.u32 1.1754944e-38, %v633
        %v635 = vsel %vm632, %v634, %v630
        %v636 = vmul.f32 1.0, %v635
        %vm637 = vcmask 253952
        %638 = vst.msk [vmem:[%s289] sm:$0x1] %vm637, %v636
        %s639 = sand.u32 %s142, 1
        %s640 = scalar_lea.sflag [#allocation4], %s639
        %s641 = sand.u32 %s142, 1
        %s642 = scalar_lea.vmem [#allocation10], %s641
        // Predicated region
        $region57: #{tpu_custom_call.1} parent=39 // pred_check
          %p643 = pneg %p152
        $region58: #{tpu_custom_call.1} parent=39 // pred_check_branch
          %645 = sbr.rel (%p643) target = $region60
        $region59: #{tpu_custom_call.1} parent=39 // pred_region
          %647 = vsyncadd %s640, 0
          %s648 = scalar_lea.hbm %s5, %s24
          %s650 = sshll.u32 %s642, 4
          %s651 = int_to_ptr.vmem [resolvable:$true] %s650
          %s652 = sshll.u32 %s648, 4
          %s653 = int_to_ptr.hbm [resolvable:$true] %s652
          %655 = dma.vmem_to_hbm [thread:$0]  %s651, 16, %s653, %s640
        $region60: #{tpu_custom_call.1} parent=39 // pred_fallthru
          _
      $region40: #{tpu_custom_call.1} parent=5 // pred_fallthru
        _
      %p656 = scmp.le.s32.totalorder 2, %s19
      // Predicated region
      $region61: #{tpu_custom_call.1} parent=5 // pred_check
        %p657 = pneg %p656
      $region62: #{tpu_custom_call.1} parent=5 // pred_check_branch
        %659 = sbr.rel (%p657) target = $region64
      $region63: #{tpu_custom_call.1} parent=5 // pred_region
        %s660 = ssub.s32 %s19, 2
        // Predicated region
        $region65: #{tpu_custom_call.1} parent=63 // pred_check
          %p661 = pneg %p158
        $region66: #{tpu_custom_call.1} parent=63 // pred_check_branch
          %663 = sbr.rel (%p661) target = $region68
        $region67: #{tpu_custom_call.1} parent=63 // pred_region
          %s664 = sand.u32 %s143, 1
          %s665 = scalar_lea.sflag [#allocation4], %s664
          %s666 = sand.u32 %s143, 1
          %s667 = scalar_lea.vmem [#allocation10], %s666
          %669 = dma.done %s665, 16
        $region68: #{tpu_custom_call.1} parent=63 // pred_fallthru
          _
      $region64: #{tpu_custom_call.1} parent=5 // pred_fallthru
        _
    $region6: #{tpu_custom_call.1} parent=1 // loop_footer
      %s23 = sadd.s32 1, %s19
    $region7: #{tpu_custom_call.1} parent=1 // loop_footer_branch
      %18 = sbr.rel target = $region3
    $region8: #{tpu_custom_call.1} parent=1 // loop_exit
      _
    %670 = vsyncpa [#allocation3], 1
    %s671 = scalar_lea.sflag [#allocation3], 1
    %672 = vsyncpa %s671, 1
    %673 = vsyncpa [#allocation6], 1
    %674 = vsyncpa [#allocation9], 1
    %675 = vsyncpa [#allocation4], 1
    %s676 = scalar_lea.sflag [#allocation4], 1
    %677 = vsyncpa %s676, 1

</llo_original>
